<compile_context>
chip_gen: v7x
topology: tpu7x:2x2x1
jax: 0.10.0
libtpu: 0.0.40
codegen_flags: <defaults>
</compile_context>

<pallas_src>
import functools

import jax
import jax.numpy as jnp
import numpy as np
from jax.experimental import pallas as pl
from jax.experimental.pallas import tpu as pltpu


# ----------------------------------------------------------------------------------
# Kernel: per (batch, query-tile) attention.  All heavy per-key work is precomputed.
# ----------------------------------------------------------------------------------
def _gat_attention_kernel(s1_ref, s2_ref, wh_ref, o_ref, *, alpha, exp_in_bf16):
    # s1_ref: (1, TQ, 1)           f32  -- Wh @ a1 for this query tile
    # s2_ref: (1, 1, N_pad)        f32  -- Wh @ a2 for all keys (padded keys = -1e30)
    # wh_ref: (1, N_pad, Fout_pad) bf16 -- key/value projection (zero-padded)
    # o_ref : (1, TQ, Fout_pad)    f32
    s1 = s1_ref[0]                       # (TQ, 1)
    s2 = s2_ref[0]                       # (1, N_pad)
    wh = wh_ref[0]                       # (N_pad, Fout_pad) bf16

    # Attention logits: pure VPU broadcast add + LeakyReLU (f32).
    e = s1 + s2                          # (TQ, N_pad)
    e = jnp.where(e > 0, e, alpha * e)   # LeakyReLU(alpha)

    # Row softmax with normalization deferred past the value matmul.
    m = jnp.max(e, axis=-1, keepdims=True)
    em = e - m
    if exp_in_bf16:
        # bf16 EUP exp on v6e/v7x: halves the footprint of p and feeds the MXU directly.
        p = jnp.exp(em.astype(jnp.bfloat16))                                 # (TQ, N_pad)
        denom = jnp.sum(p.astype(jnp.float32), axis=-1, keepdims=True)       # f32 sum
        p_mxu = p
    else:
        # v5e has no bf16 EUP/VPU: keep the softmax math in f32.
        p = jnp.exp(em)
        denom = jnp.sum(p, axis=-1, keepdims=True)
        p_mxu = p.astype(jnp.bfloat16)

    # Value matmul on the MXU: bf16 operands, f32 accumulation.
    ctx = jnp.dot(p_mxu, wh, preferred_element_type=jnp.float32)             # (TQ, Fout_pad)
    o_ref[0] = (ctx * pl.reciprocal(denom, approx=True)).astype(o_ref.dtype)


# ----------------------------------------------------------------------------------
# Wrapper helpers
# ----------------------------------------------------------------------------------
def _round_up(x, m):
    return ((x + m - 1) // m) * m


def _tpu_kind():
    try:
        return jax.devices()[0].device_kind.lower()
    except Exception:
        return ""


def _vmem_limit_bytes(kind):
    if any(v in kind for v in ("v5", "v6")):
        return 100 * 1024 * 1024     # 128 MiB physical VMEM parts: leave pipelining headroom
    if "v7" in kind:
        return 48 * 1024 * 1024      # v7x: 64 MiB physical VMEM per TensorCore
    return None                      # unknown part: keep the compiler default


def _resident_vmem_bytes(tq, n_pad, fout_pad):
    """Rough per-step resident-set estimate (conservatively double-buffered)."""
    wh = 2 * n_pad * fout_pad * 2            # bf16 key/value projection
    out = 2 * tq * fout_pad * 4              # f32 output tile
    scores = 2 * (tq + n_pad) * 4            # s1 / s2
    work = 4 * tq * n_pad * 4                # e / p and temporaries (generous)
    return wh + out + scores + work


def _pick_tiling(n, fout_pad, kind, vmem_budget):
    if n < 128:
        tq = max(8, _round_up(n, 8))
        return tq, _round_up(n, tq)
    older = any(v in kind for v in ("v2", "v3", "v4", "v5"))
    # v5e MXU is 4x128^2 (128-row tiles saturate it); v6e/v7x MXUs are 2x256^2.
    tq = 128 if (older or n < 256) else 256
    budget = vmem_budget if vmem_budget is not None else 32 * 1024 * 1024
    # v7x: only keep the 256-row tile when the resident set clearly fits.
    while tq > 128 and _resident_vmem_bytes(tq, _round_up(n, tq), fout_pad) > 0.75 * budget:
        tq //= 2
    return tq, _round_up(n, tq)


def _maybe_buffered_spec(shape, index_map, buffer_count):
    """BlockSpec requesting `buffer_count` pipeline buffers when supported."""
    if buffer_count is not None and hasattr(pl, "Buffered"):
        try:
            return pl.BlockSpec(shape, index_map, pipeline_mode=pl.Buffered(buffer_count))
        except TypeError:
            pass
    return pl.BlockSpec(shape, index_map)


# ----------------------------------------------------------------------------------
# Public forward
# ----------------------------------------------------------------------------------
def graph_attention_layer(h, W, a, alpha=0.2):
    """Pallas forward of GraphAttentionLayer (eval-mode dropout = identity).

    h: (B, N, Fin) float32;  W: (Fin, Fout) float32;  a: (2*Fout, 1) float32
    returns: (B, N, Fout) float32
    """
    B, N, Fin = h.shape
    Fout = W.shape[1]
    LANE = 128

    kind = _tpu_kind()
    vmem_limit = _vmem_limit_bytes(kind)
    want_bf16_exp = ("v6" in kind) or ("v7" in kind)

    Fout_pad = _round_up(Fout, LANE)
    TQ, N_pad = _pick_tiling(N, Fout_pad, kind, vmem_limit)
    pad_n = N_pad - N

    # --- per-batch precompute, hoisted out of the per-query-tile grid -------------
    Wh = jnp.einsum("bnf,fe->bne", h, W)                        # (B, N, Fout) f32
    s1 = jnp.einsum("bne,e->bn", Wh, a[:Fout, 0])               # (B, N)  query logit term
    s2 = jnp.einsum("bne,e->bn", Wh, a[Fout:, 0])               # (B, N)  key logit term

    wh_p = jnp.pad(Wh, ((0, 0), (0, pad_n), (0, Fout_pad - Fout))).astype(jnp.bfloat16)
    s1_p = jnp.pad(s1, ((0, 0), (0, pad_n)))[:, :, None]                             # (B, N_pad, 1)
    # Padded keys get -1e30 so they vanish from the softmax denominator.
    s2_p = jnp.pad(s2, ((0, 0), (0, pad_n)), constant_values=-1e30)[:, None, :]      # (B, 1, N_pad)

    cp_kwargs = dict(dimension_semantics=("parallel", "parallel"))
    if vmem_limit is not None:
        cp_kwargs["vmem_limit_bytes"] = vmem_limit

    def _call(single_buffer_invariants, exp_in_bf16):
        kernel = functools.partial(_gat_attention_kernel,
                                   alpha=alpha, exp_in_bf16=exp_in_bf16)
        invariant_buffers = 1 if single_buffer_invariants else None
        in_specs = [
            # streaming query logit tile
            pl.BlockSpec((1, TQ, 1), lambda b, q: (b, q, 0)),
            # grid-invariant across q: key logit row and key/value projection
            _maybe_buffered_spec((1, 1, N_pad), lambda b, q: (b, 0, 0), invariant_buffers),
            _maybe_buffered_spec((1, N_pad, Fout_pad), lambda b, q: (b, 0, 0),
                                 invariant_buffers),
        ]
        return pl.pallas_call(
            kernel,
            out_shape=jax.ShapeDtypeStruct((B, N_pad, Fout_pad), jnp.float32),
            grid_spec=pltpu.PrefetchScalarGridSpec(
                num_scalar_prefetch=0,
                grid=(B, N_pad // TQ),
                in_specs=in_specs,
                out_specs=pl.BlockSpec((1, TQ, Fout_pad), lambda b, q: (b, q, 0)),
            ),
            compiler_params=pltpu.CompilerParams(**cp_kwargs),
        )(s1_p, s2_p, wh_p)

    # Preferred config first; fall back to more conservative configs if the installed
    # jax / chip rejects single buffering or bf16 exp.
    configs = [(True, want_bf16_exp), (False, want_bf16_exp)]
    if want_bf16_exp:
        configs.append((False, False))

    out = None
    last_err = None
    for single_buffer, bf16_exp in configs:
        try:
            out = _call(single_buffer, bf16_exp)
            break
        except Exception as err:        # fall back to a more conservative config
            last_err = err
    if out is None:
        raise last_err

    return out[:, :N, :Fout]


# ----------------------------------------------------------------------------------
# Reference + test
# ----------------------------------------------------------------------------------
def _xavier_uniform(key, shape, gain):
    # matches nn.init.xavier_uniform_: U(-a, a), a = gain * sqrt(6 / (fan_in + fan_out))
    fan_in, fan_out = shape[0], shape[1]
    limit = gain * np.sqrt(6.0 / (fan_in + fan_out))
    return jax.random.uniform(key, shape, jnp.float32, -limit, limit)


def reference_forward(h, W, a, alpha):
    # Pure-JAX f32 reference mirroring the PyTorch module (eval mode, no adjacency mask).
    Fout = W.shape[1]
    Wh = jnp.einsum("bnf,fe->bne", h, W)
    Wh1 = Wh @ a[:Fout, :]                      # (B, N, 1)
    Wh2 = Wh @ a[Fout:, :]                      # (B, N, 1)
    e = Wh1 + jnp.transpose(Wh2, (0, 2, 1))     # (B, N, N)
    e = jnp.where(e > 0, e, alpha * e)
    att = jax.nn.softmax(e, axis=-1)
    return jnp.einsum("bnm,bme->bne", att, Wh)


if __name__ == "__main__":
    B, N, Fin, Fout = 2, 8, 16, 32
    alpha = 0.2

    key = jax.random.PRNGKey(0)
    k_h, k_W, k_a = jax.random.split(key, 3)

    h = jax.random.normal(k_h, (B, N, Fin), jnp.float32)
    W = _xavier_uniform(k_W, (Fin, Fout), gain=1.414)
    a = _xavier_uniform(k_a, (2 * Fout, 1), gain=1.414)

    out = graph_attention_layer(h, W, a, alpha=alpha)
    out = jax.block_until_ready(out)

    ref = reference_forward(h, W, a, alpha)
    # bf16 MXU operands / bf16 exp (f32 accumulate) and approx reciprocal => compare
    # against the f32 reference with bf16-appropriate tolerances.
    np.testing.assert_allclose(np.asarray(out), np.asarray(ref), rtol=5e-2, atol=5e-2)

    print("KERNEL_OK")
</pallas_src>

<mosaic_0001>
module attributes {stable_mosaic.version = 11 : i64} {
  func.func @_gat_attention_kernel(%arg0: i32, %arg1: i32, %arg2: memref<1x8x1xf32, #tpu.memory_space<vmem>>, %arg3: memref<1x1x8xf32, #tpu.memory_space<vmem>>, %arg4: memref<1x8x128xbf16, #tpu.memory_space<vmem>>, %arg5: memref<1x8x128xf32, #tpu.memory_space<vmem>>) attributes {dimension_semantics = [#tpu.dimension_semantics<parallel>, #tpu.dimension_semantics<parallel>], iteration_bounds = array<i64: 2, 1>, scalar_prefetch = 0 : i64, scratch_operands = 0 : i64, tpu.core_type = #tpu.core_type<tc>, window_params = [{transform_indices = @transform_0, window_bounds = array<i64: 1, 8, 1>}, {pipeline_mode = #tpu.pipeline_mode<synchronous>, transform_indices = @transform_1, window_bounds = array<i64: 1, 1, 8>}, {pipeline_mode = #tpu.pipeline_mode<synchronous>, transform_indices = @transform_2, window_bounds = array<i64: 1, 8, 128>}, {transform_indices = @transform_3, window_bounds = array<i64: 1, 8, 128>}]} {
    %c0 = arith.constant 0 : index
    %c0_0 = arith.constant 0 : index
    %c0_1 = arith.constant 0 : index
    %0 = vector.load %arg2[%c0, %c0_0, %c0_1] : memref<1x8x1xf32, #tpu.memory_space<vmem>>, vector<1x8x1xf32>
    %1 = vector.shape_cast %0 : vector<1x8x1xf32> to vector<8x1xf32>
    %c0_2 = arith.constant 0 : index
    %c0_3 = arith.constant 0 : index
    %c0_4 = arith.constant 0 : index
    %2 = vector.load %arg3[%c0_2, %c0_3, %c0_4] : memref<1x1x8xf32, #tpu.memory_space<vmem>>, vector<1x1x8xf32>
    %3 = vector.shape_cast %2 : vector<1x1x8xf32> to vector<1x8xf32>
    %c0_5 = arith.constant 0 : index
    %c0_6 = arith.constant 0 : index
    %c0_7 = arith.constant 0 : index
    %4 = vector.load %arg4[%c0_5, %c0_6, %c0_7] : memref<1x8x128xbf16, #tpu.memory_space<vmem>>, vector<1x8x128xbf16>
    %5 = vector.shape_cast %4 : vector<1x8x128xbf16> to vector<8x128xbf16>
    %6 = vector.broadcast %1 : vector<8x1xf32> to vector<8x8xf32>
    %7 = vector.broadcast %3 : vector<1x8xf32> to vector<8x8xf32>
    %8 = arith.addf %6, %7 : vector<8x8xf32>
    %cst = arith.constant 0.000000e+00 : f32
    %9 = vector.broadcast %cst : f32 to vector<8x8xf32>
    %10 = arith.cmpf ogt, %8, %9 : vector<8x8xf32>
    %cst_8 = arith.constant 2.000000e-01 : f32
    %11 = vector.broadcast %cst_8 : f32 to vector<8x8xf32>
    %12 = arith.mulf %11, %8 : vector<8x8xf32>
    %13 = arith.select %10, %8, %12 : vector<8x8xi1>, vector<8x8xf32>
    %cst_9 = arith.constant dense<0xFF800000> : vector<8xf32>
    %14 = vector.multi_reduction <maximumf>, %13, %cst_9 [1] : vector<8x8xf32> to vector<8xf32>
    %15 = vector.shape_cast %14 : vector<8xf32> to vector<8x1xf32>
    %16 = vector.broadcast %15 : vector<8x1xf32> to vector<8x8xf32>
    %17 = arith.subf %13, %16 : vector<8x8xf32>
    %18 = math.exp %17 : vector<8x8xf32>
    %cst_10 = arith.constant dense<0.000000e+00> : vector<8xf32>
    %19 = vector.multi_reduction <add>, %18, %cst_10 [1] : vector<8x8xf32> to vector<8xf32>
    %20 = vector.shape_cast %19 : vector<8xf32> to vector<8x1xf32>
    %21 = arith.truncf %18 : vector<8x8xf32> to vector<8x8xbf16>
    %cst_11 = arith.constant dense<0.000000e+00> : vector<8x128xf32>
    %22 = tpu.matmul %21, %5, %cst_11 {dimension_numbers = #tpu.dot_dimension_numbers<[1], [0], [0], [1], [0, 0, 1, 1], [], []>} : vector<8x8xbf16>, vector<8x128xbf16>, vector<8x128xf32> -> vector<8x128xf32>
    %23 = tpu.reciprocal %20 {approx = true} : vector<8x1xf32> -> vector<8x1xf32>
    %24 = vector.broadcast %23 : vector<8x1xf32> to vector<8x128xf32>
    %25 = arith.mulf %22, %24 : vector<8x128xf32>
    %c0_12 = arith.constant 0 : index
    %c0_13 = arith.constant 0 : index
    %c0_14 = arith.constant 0 : index
    %26 = vector.load %arg5[%c0_12, %c0_13, %c0_14] : memref<1x8x128xf32, #tpu.memory_space<vmem>>, vector<1x8x128xf32>
    %27 = vector.shape_cast %26 : vector<1x8x128xf32> to vector<8x128xf32>
    %28 = vector.shape_cast %25 : vector<8x128xf32> to vector<1x8x128xf32>
    tpu.vector_store %arg5[%c0_12, %c0_13, %c0_14], %28 {strides = array<i32>} : memref<1x8x128xf32, #tpu.memory_space<vmem>>, vector<1x8x128xf32>,
    return
  }
  func.func @transform_0(%arg0: i32, %arg1: i32) -> (i32, i32, i32) {
    %c0_i32 = arith.constant 0 : i32
    %c0_i32_0 = arith.constant 0 : i32
    return %arg0, %arg1, %c0_i32 : i32, i32, i32
  }
  func.func @transform_1(%arg0: i32, %arg1: i32) -> (i32, i32, i32) {
    %c0_i32 = arith.constant 0 : i32
    %c0_i32_0 = arith.constant 0 : i32
    %c0_i32_1 = arith.constant 0 : i32
    return %arg0, %c0_i32, %c0_i32_0 : i32, i32, i32
  }
  func.func @transform_2(%arg0: i32, %arg1: i32) -> (i32, i32, i32) {
    %c0_i32 = arith.constant 0 : i32
    %c0_i32_0 = arith.constant 0 : i32
    %c0_i32_1 = arith.constant 0 : i32
    return %arg0, %c0_i32, %c0_i32_0 : i32, i32, i32
  }
  func.func @transform_3(%arg0: i32, %arg1: i32) -> (i32, i32, i32) {
    %c0_i32 = arith.constant 0 : i32
    %c0_i32_0 = arith.constant 0 : i32
    return %arg0, %arg1, %c0_i32 : i32, i32, i32
  }
}

module attributes {stable_mosaic.version = 11 : i64} {
  func.func @_gat_attention_kernel(%arg0: i32, %arg1: i32, %arg2: memref<1x8x1xf32, #tpu.memory_space<vmem>>, %arg3: memref<1x1x8xf32, #tpu.memory_space<vmem>>, %arg4: memref<1x8x128xbf16, #tpu.memory_space<vmem>>, %arg5: memref<1x8x128xf32, #tpu.memory_space<vmem>>) attributes {dimension_semantics = [#tpu.dimension_semantics<parallel>, #tpu.dimension_semantics<parallel>], iteration_bounds = array<i64: 2, 1>, scalar_prefetch = 0 : i64, scratch_operands = 0 : i64, tpu.core_type = #tpu.core_type<tc>, window_params = [{transform_indices = @transform_0, window_bounds = array<i64: 1, 8, 1>}, {transform_indices = @transform_1, window_bounds = array<i64: 1, 1, 8>}, {transform_indices = @transform_2, window_bounds = array<i64: 1, 8, 128>}, {transform_indices = @transform_3, window_bounds = array<i64: 1, 8, 128>}]} {
    %c0 = arith.constant 0 : index
    %c0_0 = arith.constant 0 : index
    %c0_1 = arith.constant 0 : index
    %0 = vector.load %arg2[%c0, %c0_0, %c0_1] : memref<1x8x1xf32, #tpu.memory_space<vmem>>, vector<1x8x1xf32>
    %1 = vector.shape_cast %0 : vector<1x8x1xf32> to vector<8x1xf32>
    %c0_2 = arith.constant 0 : index
    %c0_3 = arith.constant 0 : index
    %c0_4 = arith.constant 0 : index
    %2 = vector.load %arg3[%c0_2, %c0_3, %c0_4] : memref<1x1x8xf32, #tpu.memory_space<vmem>>, vector<1x1x8xf32>
    %3 = vector.shape_cast %2 : vector<1x1x8xf32> to vector<1x8xf32>
    %c0_5 = arith.constant 0 : index
    %c0_6 = arith.constant 0 : index
    %c0_7 = arith.constant 0 : index
    %4 = vector.load %arg4[%c0_5, %c0_6, %c0_7] : memref<1x8x128xbf16, #tpu.memory_space<vmem>>, vector<1x8x128xbf16>
    %5 = vector.shape_cast %4 : vector<1x8x128xbf16> to vector<8x128xbf16>
    %6 = vector.broadcast %1 : vector<8x1xf32> to vector<8x8xf32>
    %7 = vector.broadcast %3 : vector<1x8xf32> to vector<8x8xf32>
    %8 = arith.addf %6, %7 : vector<8x8xf32>
    %cst = arith.constant 0.000000e+00 : f32
    %9 = vector.broadcast %cst : f32 to vector<8x8xf32>
    %10 = arith.cmpf ogt, %8, %9 : vector<8x8xf32>
    %cst_8 = arith.constant 2.000000e-01 : f32
    %11 = vector.broadcast %cst_8 : f32 to vector<8x8xf32>
    %12 = arith.mulf %11, %8 : vector<8x8xf32>
    %13 = arith.select %10, %8, %12 : vector<8x8xi1>, vector<8x8xf32>
    %cst_9 = arith.constant dense<0xFF800000> : vector<8xf32>
    %14 = vector.multi_reduction <maximumf>, %13, %cst_9 [1] : vector<8x8xf32> to vector<8xf32>
    %15 = vector.shape_cast %14 : vector<8xf32> to vector<8x1xf32>
    %16 = vector.broadcast %15 : vector<8x1xf32> to vector<8x8xf32>
    %17 = arith.subf %13, %16 : vector<8x8xf32>
    %18 = math.exp %17 : vector<8x8xf32>
    %cst_10 = arith.constant dense<0.000000e+00> : vector<8xf32>
    %19 = vector.multi_reduction <add>, %18, %cst_10 [1] : vector<8x8xf32> to vector<8xf32>
    %20 = vector.shape_cast %19 : vector<8xf32> to vector<8x1xf32>
    %21 = arith.truncf %18 : vector<8x8xf32> to vector<8x8xbf16>
    %cst_11 = arith.constant dense<0.000000e+00> : vector<8x128xf32>
    %22 = tpu.matmul %21, %5, %cst_11 {dimension_numbers = #tpu.dot_dimension_numbers<[1], [0], [0], [1], [0, 0, 1, 1], [], []>} : vector<8x8xbf16>, vector<8x128xbf16>, vector<8x128xf32> -> vector<8x128xf32>
    %23 = tpu.reciprocal %20 {approx = true} : vector<8x1xf32> -> vector<8x1xf32>
    %24 = vector.broadcast %23 : vector<8x1xf32> to vector<8x128xf32>
    %25 = arith.mulf %22, %24 : vector<8x128xf32>
    %c0_12 = arith.constant 0 : index
    %c0_13 = arith.constant 0 : index
    %c0_14 = arith.constant 0 : index
    %26 = vector.load %arg5[%c0_12, %c0_13, %c0_14] : memref<1x8x128xf32, #tpu.memory_space<vmem>>, vector<1x8x128xf32>
    %27 = vector.shape_cast %26 : vector<1x8x128xf32> to vector<8x128xf32>
    %28 = vector.shape_cast %25 : vector<8x128xf32> to vector<1x8x128xf32>
    tpu.vector_store %arg5[%c0_12, %c0_13, %c0_14], %28 {strides = array<i32>} : memref<1x8x128xf32, #tpu.memory_space<vmem>>, vector<1x8x128xf32>,
    return
  }
  func.func @transform_0(%arg0: i32, %arg1: i32) -> (i32, i32, i32) {
    %c0_i32 = arith.constant 0 : i32
    %c0_i32_0 = arith.constant 0 : i32
    return %arg0, %arg1, %c0_i32 : i32, i32, i32
  }
  func.func @transform_1(%arg0: i32, %arg1: i32) -> (i32, i32, i32) {
    %c0_i32 = arith.constant 0 : i32
    %c0_i32_0 = arith.constant 0 : i32
    %c0_i32_1 = arith.constant 0 : i32
    return %arg0, %c0_i32, %c0_i32_0 : i32, i32, i32
  }
  func.func @transform_2(%arg0: i32, %arg1: i32) -> (i32, i32, i32) {
    %c0_i32 = arith.constant 0 : i32
    %c0_i32_0 = arith.constant 0 : i32
    %c0_i32_1 = arith.constant 0 : i32
    return %arg0, %c0_i32, %c0_i32_0 : i32, i32, i32
  }
  func.func @transform_3(%arg0: i32, %arg1: i32) -> (i32, i32, i32) {
    %c0_i32 = arith.constant 0 : i32
    %c0_i32_0 = arith.constant 0 : i32
    return %arg0, %arg1, %c0_i32 : i32, i32, i32
  }
}

</mosaic_0001>

<llo_original>
// kernel: tpu_custom_call.1
$region0: #{tpu_custom_call.1}
  #allocation0 [shape = 'u32[]', space=smem, size = 0x4, offset = 0x4, fixed_abs, tag = 'smem constant byte address 0x4 - core index']
  #allocation1 [shape = 'u32[144,128]{1,0:T(1,128)}', space=vmem, size = 0x12000, scoped, tag = 'internal scratch']
  %s0 = inlined_call_operand.vmem [shape: f32[2,8,1], index: 0, kind: input, shape index: {}]
  %s1 = inlined_call_operand.vmem [shape: f32[2,1,8], index: 1, kind: input, shape index: {}]
  %s2 = inlined_call_operand.vmem [shape: bf16[2,8,128], index: 2, kind: input, shape index: {}]
  %s3 = inlined_call_operand.hbm [shape: f32[2,8,128], index: 3, kind: output, shape index: {}]
  %s4 = sld [smem:[#allocation0]]
  $region45: #{tpu_custom_call.1} parent=0
    _
  %s6 = ssub.s32 1, %s4
  %s7 = scalar_select 0, %s6, %s4
  $region1: #{tpu_custom_call.1} parent=0
    #allocation2 [shape = 'u8[8192]{0}', space=vmem, size = 0x2000, scoped, tag = 'output window, operand 0']
    #allocation3 [shape = 's32[2]{0}', space=sflag, size = 0x8, scoped, tag = 'scoped memory for tpu_custom_call.1']
    %8 = vsyncpa [#allocation3], 0
    %s9 = scalar_lea.sflag [#allocation3], 1
    %10 = vsyncpa %s9, 0
    loop: start=0, step=1, limit=4
    $region2: #{tpu_custom_call.1} parent=1 // loop_pre_header
      _
    $region3: #{tpu_custom_call.1} parent=1 // loop_header
      %s12 = sphi 0, %s16
      %p13 = scmp.ge.s32.totalorder %s12, 4
      %s19 = sphi 0, %s31
      %s20 = sphi 0, %s27
      %s21 = sphi 0, %s19
      %s22 = sphi 0, %s20
      %s23 = sphi 0, %s21
      %s24 = sphi 0, %s22
      %s36 = sphi 0, %s38
      %s39 = sphi 0, %s36
      %s40 = sphi 0, %s39
      %s56 = sphi 0, %s40
      %s62 = sphi 0, %s64
      %s65 = sphi 0, %s62
      %s66 = sphi 0, %s65
      %s82 = sphi 0, %s66
      %s88 = sphi 0, %s90
      %s91 = sphi 0, %s88
      %s92 = sphi 0, %s91
      %s108 = sphi 0, %s92
      %s116 = sphi 0, %s118
      %s119 = sphi 0, %s116
      %s120 = sphi 0, %s119
      %s136 = sphi 0, %s120
    $region4: #{tpu_custom_call.1} parent=1 // loop_header_branch
      %15 = sbr.rel (%p13) target = $region8
    $region5: #{tpu_custom_call.1} parent=1 // loop_body
      %s17 = ssub.s32 %s12, 1
      %s18 = ssub.s32 %s12, 2
      %s25 = sadd.s32 1, %s20
      %p26 = scmp.ge.s32.totalorder %s25, 1
      %s27 = scalar_select %p26, 0, %s25
      %s28 = sadd.s32 1, %s19
      %s29 = scalar_select %p26, %s28, %s19
      %p30 = scmp.ge.s32.totalorder %s29, 2
      %s31 = scalar_select %p30, 0, %s29
      %s32 = ssub.s32 %s19, %s31
      %s33 = ssub.s32 %s20, %s27
      %s34 = sor.u32 %s32, %s33
      %p35 = scmp.eq.s32.totalorder %s34, 0
      %s37 = sadd.s32 %s36, 1
      %s38 = scalar_select %p35, %s36, %s37
      %p41 = pneg %p35
      %p42 = scmp.eq.s32.totalorder %s12, 1
      %p43 = por %p41, %p42
      %p44 = scmp.ne.s32.totalorder %s36, %s39
      %p45 = scmp.eq.s32.totalorder %s12, 0
      %p46 = por %p44, %p45
      %p47 = scmp.ne.s32.totalorder %s36, %s39
      %p48 = scmp.eq.s32.totalorder %s17, 1
      %p49 = por %p47, %p48
      %p50 = scmp.ne.s32.totalorder %s39, %s40
      %p51 = scmp.eq.s32.totalorder %s17, 0
      %p52 = por %p50, %p51
      %p53 = scmp.ne.s32.totalorder %s39, %s40
      %p54 = scmp.eq.s32.totalorder %s18, 1
      %p55 = por %p53, %p54
      %p57 = scmp.ne.s32.totalorder %s40, %s56
      %p58 = scmp.eq.s32.totalorder %s18, 0
      %p59 = por %p57, %p58
      %s60 = ssub.s32 %s19, %s31
      %p61 = scmp.eq.s32.totalorder %s60, 0
      %s63 = sadd.s32 %s62, 1
      %s64 = scalar_select %p61, %s62, %s63
      %p67 = pneg %p61
      %p68 = scmp.eq.s32.totalorder %s12, 1
      %p69 = por %p67, %p68
      %p70 = scmp.ne.s32.totalorder %s62, %s65
      %p71 = scmp.eq.s32.totalorder %s12, 0
      %p72 = por %p70, %p71
      %p73 = scmp.ne.s32.totalorder %s62, %s65
      %p74 = scmp.eq.s32.totalorder %s17, 1
      %p75 = por %p73, %p74
      %p76 = scmp.ne.s32.totalorder %s65, %s66
      %p77 = scmp.eq.s32.totalorder %s17, 0
      %p78 = por %p76, %p77
      %p79 = scmp.ne.s32.totalorder %s65, %s66
      %p80 = scmp.eq.s32.totalorder %s18, 1
      %p81 = por %p79, %p80
      %p83 = scmp.ne.s32.totalorder %s66, %s82
      %p84 = scmp.eq.s32.totalorder %s18, 0
      %p85 = por %p83, %p84
      %s86 = ssub.s32 %s19, %s31
      %p87 = scmp.eq.s32.totalorder %s86, 0
      %s89 = sadd.s32 %s88, 1
      %s90 = scalar_select %p87, %s88, %s89
      %p93 = pneg %p87
      %p94 = scmp.eq.s32.totalorder %s12, 1
      %p95 = por %p93, %p94
      %p96 = scmp.ne.s32.totalorder %s88, %s91
      %p97 = scmp.eq.s32.totalorder %s12, 0
      %p98 = por %p96, %p97
      %p99 = scmp.ne.s32.totalorder %s88, %s91
      %p100 = scmp.eq.s32.totalorder %s17, 1
      %p101 = por %p99, %p100
      %p102 = scmp.ne.s32.totalorder %s91, %s92
      %p103 = scmp.eq.s32.totalorder %s17, 0
      %p104 = por %p102, %p103
      %p105 = scmp.ne.s32.totalorder %s91, %s92
      %p106 = scmp.eq.s32.totalorder %s18, 1
      %p107 = por %p105, %p106
      %p109 = scmp.ne.s32.totalorder %s92, %s108
      %p110 = scmp.eq.s32.totalorder %s18, 0
      %p111 = por %p109, %p110
      %s112 = ssub.s32 %s19, %s31
      %s113 = ssub.s32 %s20, %s27
      %s114 = sor.u32 %s112, %s113
      %p115 = scmp.eq.s32.totalorder %s114, 0
      %s117 = sadd.s32 %s116, 1
      %s118 = scalar_select %p115, %s116, %s117
      %p121 = pneg %p115
      %p122 = scmp.eq.s32.totalorder %s12, 1
      %p123 = por %p121, %p122
      %p124 = scmp.ne.s32.totalorder %s116, %s119
      %p125 = scmp.eq.s32.totalorder %s12, 0
      %p126 = por %p124, %p125
      %p127 = scmp.ne.s32.totalorder %s116, %s119
      %p128 = scmp.eq.s32.totalorder %s17, 1
      %p129 = por %p127, %p128
      %p130 = scmp.ne.s32.totalorder %s119, %s120
      %p131 = scmp.eq.s32.totalorder %s17, 0
      %p132 = por %p130, %p131
      %p133 = scmp.ne.s32.totalorder %s119, %s120
      %p134 = scmp.eq.s32.totalorder %s18, 1
      %p135 = por %p133, %p134
      %p137 = scmp.ne.s32.totalorder %s120, %s136
      %p138 = scmp.eq.s32.totalorder %s18, 0
      %p139 = por %p137, %p138
      %p140 = scmp.le.s32.totalorder 1, %s12
      %p141 = scmp.lt.s32.totalorder %s12, 3
      %p142 = pnand %p140, %p141
      %p143 = pneg %p142
      // Predicated region
      $region9: #{tpu_custom_call.1} parent=5 // pred_check
        _
      $region10: #{tpu_custom_call.1} parent=5 // pred_check_branch
        %145 = sbr.rel (%p142) target = $region12
      $region11: #{tpu_custom_call.1} parent=5 // pred_region
        %s146 = ssub.s32 %s12, 1
        // Predicated region
        $region13: #{tpu_custom_call.1} parent=11 // pred_check
          %p147 = pneg %p78
        $region14: #{tpu_custom_call.1} parent=11 // pred_check_branch
          %149 = sbr.rel (%p147) target = $region16
        $region15: #{tpu_custom_call.1} parent=11 // pred_region
          %p150 = scmp.lt.s32.totalorder %s21, 1
          %s151 = scalar_select %p150, %s21, 1
          %s152 = scalar_lea.vmem %s1, %s151
        $region16: #{tpu_custom_call.1} parent=11 // pred_fallthru
          _
        // Predicated region
        $region17: #{tpu_custom_call.1} parent=11 // pred_check
          %p153 = pneg %p104
        $region18: #{tpu_custom_call.1} parent=11 // pred_check_branch
          %155 = sbr.rel (%p153) target = $region20
        $region19: #{tpu_custom_call.1} parent=11 // pred_region
          %p156 = scmp.lt.s32.totalorder %s21, 1
          %s157 = scalar_select %p156, %s21, 1
          %s158 = smul.addr %s157, 4
          %s159 = scalar_lea.vmem %s2, %s158
        $region20: #{tpu_custom_call.1} parent=11 // pred_fallthru
          _
      $region12: #{tpu_custom_call.1} parent=5 // pred_fallthru
        _
      %p160 = scmp.lt.s32.totalorder %s12, 2
      // Predicated region
      $region21: #{tpu_custom_call.1} parent=5 // pred_check
        %p161 = pneg %p160
      $region22: #{tpu_custom_call.1} parent=5 // pred_check_branch
        %163 = sbr.rel (%p161) target = $region24
      $region23: #{tpu_custom_call.1} parent=5 // pred_region
        // Predicated region
        $region25: #{tpu_custom_call.1} parent=23 // pred_check
          %p164 = pneg %p46
        $region26: #{tpu_custom_call.1} parent=23 // pred_check_branch
          %166 = sbr.rel (%p164) target = $region28
        $region27: #{tpu_custom_call.1} parent=23 // pred_region
          %p167 = scmp.lt.s32.totalorder %s19, 1
          %s168 = scalar_select %p167, %s19, 1
          %p169 = scmp.lt.s32.totalorder %s20, 0
          %s170 = scalar_select %p169, %s20, 0
          %s171 = sadd.s32 %s170, %s168
          %s172 = smul.addr %s171, 8
          %s173 = scalar_lea.vmem %s0, %s172
        $region28: #{tpu_custom_call.1} parent=23 // pred_fallthru
          _
      $region24: #{tpu_custom_call.1} parent=5 // pred_fallthru
        _
      %p174 = scmp.le.s32.totalorder 1, %s12
      %p175 = scmp.lt.s32.totalorder %s12, 3
      %p176 = pnand %p174, %p175
      %p177 = pneg %p176
      // Predicated region
      $region29: #{tpu_custom_call.1} parent=5 // pred_check
        _
      $region30: #{tpu_custom_call.1} parent=5 // pred_check_branch
        %179 = sbr.rel (%p176) target = $region32
      $region31: #{tpu_custom_call.1} parent=5 // pred_region
        %s180 = ssub.s32 %s12, 1
        %p181 = scmp.lt.s32.totalorder %s21, 1
        %s182 = scalar_select %p181, %s21, 1
        %p183 = scmp.lt.s32.totalorder %s22, 0
        %s184 = scalar_select %p183, %s22, 0
        %s185 = sadd.s32 %s184, %s182
        %s186 = smul.addr %s185, 8
        %s187 = scalar_lea.vmem %s0, %s186
        %p188 = pneg %p52
        %p189 = pneg %p49
        %p190 = scmp.lt.s32.totalorder %s21, 1
        %s191 = scalar_select %p190, %s21, 1
        %s192 = scalar_lea.vmem %s1, %s191
        %p193 = pneg %p78
        %p194 = pneg %p75
        %p195 = scmp.lt.s32.totalorder %s21, 1
        %s196 = scalar_select %p195, %s21, 1
        %s197 = smul.addr %s196, 4
        %s198 = scalar_lea.vmem %s2, %s197
        %p199 = pneg %p104
        %p200 = pneg %p101
        %p201 = pneg %p132
        %p202 = pneg %p129
        %s203 = sand.u32 %s119, 1
        %s204 = scalar_lea.sflag [#allocation3], %s203
        %s205 = sand.u32 %s119, 1
        %s206 = smul.addr %s205, 8
        %s207 = scalar_lea.vmem [#allocation2], %s206
        %p208 = scmp.lt.s32.totalorder %s21, 1
        %s209 = scalar_select %p208, %s21, 1
        %p210 = scmp.lt.s32.totalorder %s22, 0
        %s211 = scalar_select %p210, %s22, 0
        %s212 = sadd.s32 %s211, %s209
        %s213 = smul.addr %s212, 8
        %s214 = scalar_lea.vmem %s0, %s213
        %p215 = scmp.lt.s32.totalorder %s21, 1
        %s216 = scalar_select %p215, %s21, 1
        %s217 = scalar_lea.vmem %s1, %s216
        %p218 = scmp.lt.s32.totalorder %s21, 1
        %s219 = scalar_select %p218, %s21, 1
        %s220 = smul.addr %s219, 4
        %s221 = scalar_lea.vmem %s2, %s220
        %v223 = vld [vmem:[%s214] sm:$0xff]
        %v224 = vld [vmem:[%s217] sm:$0x1]
        %v225 = vld [vmem:[%s221] sm:$0xf]
        %227 = vset.pattern.permute.xlu0 0
        %228 = vperm.xlu0 %227, %v223
        %v229 = vpop.permute.xlu0 %228
        %v232 = vlaneseq
        %v233 = vshrl.u32 %v232, 7
        %v234 = vsub.s32 0, %v233
        %v235 = vrot.slane %v224, %v234
        %v237 = vadd.f32 %v229, %v235
        %vm238 = vcmp.gt.f32.partialorder %v237, 0.0
        %v239 = vmul.f32 %v237, 0.2
        %v240 = vsel %vm238, %v237, %v239
        %vm241 = vcmask 64512
        %v242 = vsel %vm241, %v240, -inf
        %243 = vmax.xlane.f32.xlu0 %v242
        %v244 = vpop.xlane.xlu0 %243
        %v245 = vsub.f32 %v240, %v244
        %v246 = vmul.f32 %v245, 1.442695
        %v247 = vpow.pop %v246
        %v248 = vsel %vm241, %v247, 0.0
        %249 = vadd.xlane.f32.xlu0 %v248
        %v250 = vpop.xlane.xlu0 %249
        %v251 = vpack.c.bf16 %v247, %v247
        %v253 = vsel %vm241, %v251, 0
        %vm255 = vcmask 1043456
        %v257 = vsel %vm255, %v225, 0
        %259 = vmatprep.subr.bf16.mxu0 0
        %260 = vmatpush1.bf16.msra.mxu0 %v257
        %261 = vmatprep.subr.bf16.mxu0 0
        %262 = vmatpush1.bf16.msra.mxu0 0
        %263 = vmatprep.subr.bf16.mxu0 0
        %264 = vmatpush1.bf16.msra.mxu0 0
        %265 = vmatprep.subr.bf16.mxu0 0
        %266 = vmatpush1.bf16.msra.mxu0 0
        %267 = vmatprep.subr.bf16.mxu0 0
        %268 = vmatpush1.bf16.msra.mxu0 0
        %269 = vmatprep.subr.bf16.mxu0 0
        %270 = vmatpush1.bf16.msra.mxu0 0
        %271 = vmatprep.subr.bf16.mxu0 0
        %272 = vmatpush1.bf16.msra.mxu0 0
        %273 = vmatprep.subr.bf16.mxu0 0
        %274 = vmatpush1.bf16.msra.mxu0 0
        %275 = vmatprep.subr.bf16.mxu0 0
        %276 = vmatpush1.bf16.msra.mxu0 0
        %277 = vmatprep.subr.bf16.mxu0 0
        %278 = vmatpush1.bf16.msra.mxu0 0
        %279 = vmatprep.subr.bf16.mxu0 0
        %280 = vmatpush1.bf16.msra.mxu0 0
        %281 = vmatprep.subr.bf16.mxu0 0
        %282 = vmatpush1.bf16.msra.mxu0 0
        %283 = vmatprep.subr.bf16.mxu0 0
        %284 = vmatpush1.bf16.msra.mxu0 0
        %285 = vmatprep.subr.bf16.mxu0 0
        %286 = vmatpush1.bf16.msra.mxu0 0
        %287 = vmatprep.subr.bf16.mxu0 0
        %288 = vmatpush1.bf16.msra.mxu0 0
        %289 = vmatprep.subr.bf16.mxu0 0
        %290 = vmatpush1.bf16.msra.mxu0 0
        %291 = vmatprep.mubr.bf16.mxu0 0
        %292 = vmatmul.mubr.bf16.gmra.mrb[0].mxu0 %v253
        %v293 = vpop.f32.mrb[0].mxu0
        %v294 = vadd.f32 0.0, %v293
        %v295 = vpop.f32.mrb[0].mxu0
        %v296 = vpop.f32.mrb[0].mxu0
        %v297 = vpop.f32.mrb[0].mxu0
        %298 = vdwg.mxu0
        %v299 = vrcp.pop %v250
        %v300 = vmul.f32 %v294, %v299
        %301 = vst [vmem:[%s207] sm:$0xff] %v300
        %s302 = sand.u32 %s119, 1
        %s303 = scalar_lea.sflag [#allocation3], %s302
        %s304 = sand.u32 %s119, 1
        %s305 = smul.addr %s304, 8
        %s306 = scalar_lea.vmem [#allocation2], %s305
        // Predicated region
        $region33: #{tpu_custom_call.1} parent=31 // pred_check
          %p307 = pneg %p129
        $region34: #{tpu_custom_call.1} parent=31 // pred_check_branch
          %309 = sbr.rel (%p307) target = $region36
        $region35: #{tpu_custom_call.1} parent=31 // pred_region
          %s311 = ssub.s32 128, 128
          %312 = vsyncadd %s303, %s311
          %s313 = sadd.s32 %s22, %s21
          %s314 = smul.addr %s313, 128
          %s315 = scalar_lea.hbm %s3, %s314
          %s317 = sshll.u32 %s306, 4
          %s318 = int_to_ptr.vmem [resolvable:$true] %s317
          %320 = dma.vmem_to_hbm [thread:$0]  %s318, 128, %s315, %s303
        $region36: #{tpu_custom_call.1} parent=31 // pred_fallthru
          _
      $region32: #{tpu_custom_call.1} parent=5 // pred_fallthru
        _
      %p321 = scmp.le.s32.totalorder 2, %s12
      // Predicated region
      $region37: #{tpu_custom_call.1} parent=5 // pred_check
        %p322 = pneg %p321
      $region38: #{tpu_custom_call.1} parent=5 // pred_check_branch
        %324 = sbr.rel (%p322) target = $region40
      $region39: #{tpu_custom_call.1} parent=5 // pred_region
        %s325 = ssub.s32 %s12, 2
        // Predicated region
        $region41: #{tpu_custom_call.1} parent=39 // pred_check
          %p326 = pneg %p135
        $region42: #{tpu_custom_call.1} parent=39 // pred_check_branch
          %328 = sbr.rel (%p326) target = $region44
        $region43: #{tpu_custom_call.1} parent=39 // pred_region
          %s329 = sand.u32 %s120, 1
          %s330 = scalar_lea.sflag [#allocation3], %s329
          %s331 = sand.u32 %s120, 1
          %s332 = smul.addr %s331, 8
          %s333 = scalar_lea.vmem [#allocation2], %s332
          %334 = dma.done %s330, 128
        $region44: #{tpu_custom_call.1} parent=39 // pred_fallthru
          _
      $region40: #{tpu_custom_call.1} parent=5 // pred_fallthru
        _
    $region6: #{tpu_custom_call.1} parent=1 // loop_footer
      %s16 = sadd.s32 1, %s12
    $region7: #{tpu_custom_call.1} parent=1 // loop_footer_branch
      %11 = sbr.rel target = $region3
    $region8: #{tpu_custom_call.1} parent=1 // loop_exit
      _
    %335 = vsyncpa [#allocation3], 1
    %s336 = scalar_lea.sflag [#allocation3], 1
    %337 = vsyncpa %s336, 1

// kernel: tpu_custom_call.1
$region0: #{tpu_custom_call.1}
  #allocation0 [shape = 'u32[]', space=smem, size = 0x4, offset = 0x4, fixed_abs, tag = 'smem constant byte address 0x4 - core index']
  #allocation1 [shape = 'u32[144,128]{1,0:T(1,128)}', space=vmem, size = 0x12000, scoped, tag = 'internal scratch']
  %s0 = inlined_call_operand.vmem [shape: f32[2,8,1], index: 0, kind: input, shape index: {}]
  %s1 = inlined_call_operand.vmem [shape: f32[2,1,8], index: 1, kind: input, shape index: {}]
  %s2 = inlined_call_operand.vmem [shape: bf16[2,8,128], index: 2, kind: input, shape index: {}]
  %s3 = inlined_call_operand.hbm [shape: f32[2,8,128], index: 3, kind: output, shape index: {}]
  %s4 = sld [smem:[#allocation0]]
  $region45: #{tpu_custom_call.1} parent=0
    _
  %s6 = ssub.s32 1, %s4
  %s7 = scalar_select 0, %s6, %s4
  $region1: #{tpu_custom_call.1} parent=0
    #allocation2 [shape = 'u8[8192]{0}', space=vmem, size = 0x2000, scoped, tag = 'output window, operand 0']
    #allocation3 [shape = 's32[2]{0}', space=sflag, size = 0x8, scoped, tag = 'scoped memory for tpu_custom_call.1']
    %8 = vsyncpa [#allocation3], 0
    %s9 = scalar_lea.sflag [#allocation3], 1
    %10 = vsyncpa %s9, 0
    loop: start=0, step=1, limit=4
    $region2: #{tpu_custom_call.1} parent=1 // loop_pre_header
      _
    $region3: #{tpu_custom_call.1} parent=1 // loop_header
      %s12 = sphi 0, %s16
      %p13 = scmp.ge.s32.totalorder %s12, 4
      %s19 = sphi 0, %s31
      %s20 = sphi 0, %s27
      %s21 = sphi 0, %s19
      %s22 = sphi 0, %s20
      %s23 = sphi 0, %s21
      %s24 = sphi 0, %s22
      %s36 = sphi 0, %s38
      %s39 = sphi 0, %s36
      %s40 = sphi 0, %s39
      %s56 = sphi 0, %s40
      %s62 = sphi 0, %s64
      %s65 = sphi 0, %s62
      %s66 = sphi 0, %s65
      %s82 = sphi 0, %s66
      %s88 = sphi 0, %s90
      %s91 = sphi 0, %s88
      %s92 = sphi 0, %s91
      %s108 = sphi 0, %s92
      %s116 = sphi 0, %s118
      %s119 = sphi 0, %s116
      %s120 = sphi 0, %s119
      %s136 = sphi 0, %s120
    $region4: #{tpu_custom_call.1} parent=1 // loop_header_branch
      %15 = sbr.rel (%p13) target = $region8
    $region5: #{tpu_custom_call.1} parent=1 // loop_body
      %s17 = ssub.s32 %s12, 1
      %s18 = ssub.s32 %s12, 2
      %s25 = sadd.s32 1, %s20
      %p26 = scmp.ge.s32.totalorder %s25, 1
      %s27 = scalar_select %p26, 0, %s25
      %s28 = sadd.s32 1, %s19
      %s29 = scalar_select %p26, %s28, %s19
      %p30 = scmp.ge.s32.totalorder %s29, 2
      %s31 = scalar_select %p30, 0, %s29
      %s32 = ssub.s32 %s19, %s31
      %s33 = ssub.s32 %s20, %s27
      %s34 = sor.u32 %s32, %s33
      %p35 = scmp.eq.s32.totalorder %s34, 0
      %s37 = sadd.s32 %s36, 1
      %s38 = scalar_select %p35, %s36, %s37
      %p41 = pneg %p35
      %p42 = scmp.eq.s32.totalorder %s12, 1
      %p43 = por %p41, %p42
      %p44 = scmp.ne.s32.totalorder %s36, %s39
      %p45 = scmp.eq.s32.totalorder %s12, 0
      %p46 = por %p44, %p45
      %p47 = scmp.ne.s32.totalorder %s36, %s39
      %p48 = scmp.eq.s32.totalorder %s17, 1
      %p49 = por %p47, %p48
      %p50 = scmp.ne.s32.totalorder %s39, %s40
      %p51 = scmp.eq.s32.totalorder %s17, 0
      %p52 = por %p50, %p51
      %p53 = scmp.ne.s32.totalorder %s39, %s40
      %p54 = scmp.eq.s32.totalorder %s18, 1
      %p55 = por %p53, %p54
      %p57 = scmp.ne.s32.totalorder %s40, %s56
      %p58 = scmp.eq.s32.totalorder %s18, 0
      %p59 = por %p57, %p58
      %s60 = ssub.s32 %s19, %s31
      %p61 = scmp.eq.s32.totalorder %s60, 0
      %s63 = sadd.s32 %s62, 1
      %s64 = scalar_select %p61, %s62, %s63
      %p67 = pneg %p61
      %p68 = scmp.eq.s32.totalorder %s12, 1
      %p69 = por %p67, %p68
      %p70 = scmp.ne.s32.totalorder %s62, %s65
      %p71 = scmp.eq.s32.totalorder %s12, 0
      %p72 = por %p70, %p71
      %p73 = scmp.ne.s32.totalorder %s62, %s65
      %p74 = scmp.eq.s32.totalorder %s17, 1
      %p75 = por %p73, %p74
      %p76 = scmp.ne.s32.totalorder %s65, %s66
      %p77 = scmp.eq.s32.totalorder %s17, 0
      %p78 = por %p76, %p77
      %p79 = scmp.ne.s32.totalorder %s65, %s66
      %p80 = scmp.eq.s32.totalorder %s18, 1
      %p81 = por %p79, %p80
      %p83 = scmp.ne.s32.totalorder %s66, %s82
      %p84 = scmp.eq.s32.totalorder %s18, 0
      %p85 = por %p83, %p84
      %s86 = ssub.s32 %s19, %s31
      %p87 = scmp.eq.s32.totalorder %s86, 0
      %s89 = sadd.s32 %s88, 1
      %s90 = scalar_select %p87, %s88, %s89
      %p93 = pneg %p87
      %p94 = scmp.eq.s32.totalorder %s12, 1
      %p95 = por %p93, %p94
      %p96 = scmp.ne.s32.totalorder %s88, %s91
      %p97 = scmp.eq.s32.totalorder %s12, 0
      %p98 = por %p96, %p97
      %p99 = scmp.ne.s32.totalorder %s88, %s91
      %p100 = scmp.eq.s32.totalorder %s17, 1
      %p101 = por %p99, %p100
      %p102 = scmp.ne.s32.totalorder %s91, %s92
      %p103 = scmp.eq.s32.totalorder %s17, 0
      %p104 = por %p102, %p103
      %p105 = scmp.ne.s32.totalorder %s91, %s92
      %p106 = scmp.eq.s32.totalorder %s18, 1
      %p107 = por %p105, %p106
      %p109 = scmp.ne.s32.totalorder %s92, %s108
      %p110 = scmp.eq.s32.totalorder %s18, 0
      %p111 = por %p109, %p110
      %s112 = ssub.s32 %s19, %s31
      %s113 = ssub.s32 %s20, %s27
      %s114 = sor.u32 %s112, %s113
      %p115 = scmp.eq.s32.totalorder %s114, 0
      %s117 = sadd.s32 %s116, 1
      %s118 = scalar_select %p115, %s116, %s117
      %p121 = pneg %p115
      %p122 = scmp.eq.s32.totalorder %s12, 1
      %p123 = por %p121, %p122
      %p124 = scmp.ne.s32.totalorder %s116, %s119
      %p125 = scmp.eq.s32.totalorder %s12, 0
      %p126 = por %p124, %p125
      %p127 = scmp.ne.s32.totalorder %s116, %s119
      %p128 = scmp.eq.s32.totalorder %s17, 1
      %p129 = por %p127, %p128
      %p130 = scmp.ne.s32.totalorder %s119, %s120
      %p131 = scmp.eq.s32.totalorder %s17, 0
      %p132 = por %p130, %p131
      %p133 = scmp.ne.s32.totalorder %s119, %s120
      %p134 = scmp.eq.s32.totalorder %s18, 1
      %p135 = por %p133, %p134
      %p137 = scmp.ne.s32.totalorder %s120, %s136
      %p138 = scmp.eq.s32.totalorder %s18, 0
      %p139 = por %p137, %p138
      %p140 = scmp.le.s32.totalorder 1, %s12
      %p141 = scmp.lt.s32.totalorder %s12, 3
      %p142 = pnand %p140, %p141
      %p143 = pneg %p142
      // Predicated region
      $region9: #{tpu_custom_call.1} parent=5 // pred_check
        _
      $region10: #{tpu_custom_call.1} parent=5 // pred_check_branch
        %145 = sbr.rel (%p142) target = $region12
      $region11: #{tpu_custom_call.1} parent=5 // pred_region
        %s146 = ssub.s32 %s12, 1
      $region12: #{tpu_custom_call.1} parent=5 // pred_fallthru
        _
      %p147 = scmp.lt.s32.totalorder %s12, 2
      // Predicated region
      $region13: #{tpu_custom_call.1} parent=5 // pred_check
        %p148 = pneg %p147
      $region14: #{tpu_custom_call.1} parent=5 // pred_check_branch
        %150 = sbr.rel (%p148) target = $region16
      $region15: #{tpu_custom_call.1} parent=5 // pred_region
        // Predicated region
        $region17: #{tpu_custom_call.1} parent=15 // pred_check
          %p151 = pneg %p46
        $region18: #{tpu_custom_call.1} parent=15 // pred_check_branch
          %153 = sbr.rel (%p151) target = $region20
        $region19: #{tpu_custom_call.1} parent=15 // pred_region
          %p154 = scmp.lt.s32.totalorder %s19, 1
          %s155 = scalar_select %p154, %s19, 1
          %p156 = scmp.lt.s32.totalorder %s20, 0
          %s157 = scalar_select %p156, %s20, 0
          %s158 = sadd.s32 %s157, %s155
          %s159 = smul.addr %s158, 8
          %s160 = scalar_lea.vmem %s0, %s159
        $region20: #{tpu_custom_call.1} parent=15 // pred_fallthru
          _
        // Predicated region
        $region21: #{tpu_custom_call.1} parent=15 // pred_check
          %p161 = pneg %p72
        $region22: #{tpu_custom_call.1} parent=15 // pred_check_branch
          %163 = sbr.rel (%p161) target = $region24
        $region23: #{tpu_custom_call.1} parent=15 // pred_region
          %p164 = scmp.lt.s32.totalorder %s19, 1
          %s165 = scalar_select %p164, %s19, 1
          %s166 = scalar_lea.vmem %s1, %s165
        $region24: #{tpu_custom_call.1} parent=15 // pred_fallthru
          _
        // Predicated region
        $region25: #{tpu_custom_call.1} parent=15 // pred_check
          %p167 = pneg %p98
        $region26: #{tpu_custom_call.1} parent=15 // pred_check_branch
          %169 = sbr.rel (%p167) target = $region28
        $region27: #{tpu_custom_call.1} parent=15 // pred_region
          %p170 = scmp.lt.s32.totalorder %s19, 1
          %s171 = scalar_select %p170, %s19, 1
          %s172 = smul.addr %s171, 4
          %s173 = scalar_lea.vmem %s2, %s172
        $region28: #{tpu_custom_call.1} parent=15 // pred_fallthru
          _
      $region16: #{tpu_custom_call.1} parent=5 // pred_fallthru
        _
      %p174 = scmp.le.s32.totalorder 1, %s12
      %p175 = scmp.lt.s32.totalorder %s12, 3
      %p176 = pnand %p174, %p175
      %p177 = pneg %p176
      // Predicated region
      $region29: #{tpu_custom_call.1} parent=5 // pred_check
        _
      $region30: #{tpu_custom_call.1} parent=5 // pred_check_branch
        %179 = sbr.rel (%p176) target = $region32
      $region31: #{tpu_custom_call.1} parent=5 // pred_region
        %s180 = ssub.s32 %s12, 1
        %p181 = scmp.lt.s32.totalorder %s21, 1
        %s182 = scalar_select %p181, %s21, 1
        %p183 = scmp.lt.s32.totalorder %s22, 0
        %s184 = scalar_select %p183, %s22, 0
        %s185 = sadd.s32 %s184, %s182
        %s186 = smul.addr %s185, 8
        %s187 = scalar_lea.vmem %s0, %s186
        %p188 = pneg %p52
        %p189 = pneg %p49
        %p190 = scmp.lt.s32.totalorder %s21, 1
        %s191 = scalar_select %p190, %s21, 1
        %s192 = scalar_lea.vmem %s1, %s191
        %p193 = pneg %p78
        %p194 = pneg %p75
        %p195 = scmp.lt.s32.totalorder %s21, 1
        %s196 = scalar_select %p195, %s21, 1
        %s197 = smul.addr %s196, 4
        %s198 = scalar_lea.vmem %s2, %s197
        %p199 = pneg %p104
        %p200 = pneg %p101
        %p201 = pneg %p132
        %p202 = pneg %p129
        %s203 = sand.u32 %s119, 1
        %s204 = scalar_lea.sflag [#allocation3], %s203
        %s205 = sand.u32 %s119, 1
        %s206 = smul.addr %s205, 8
        %s207 = scalar_lea.vmem [#allocation2], %s206
        %p208 = scmp.lt.s32.totalorder %s21, 1
        %s209 = scalar_select %p208, %s21, 1
        %p210 = scmp.lt.s32.totalorder %s22, 0
        %s211 = scalar_select %p210, %s22, 0
        %s212 = sadd.s32 %s211, %s209
        %s213 = smul.addr %s212, 8
        %s214 = scalar_lea.vmem %s0, %s213
        %p215 = scmp.lt.s32.totalorder %s21, 1
        %s216 = scalar_select %p215, %s21, 1
        %s217 = scalar_lea.vmem %s1, %s216
        %p218 = scmp.lt.s32.totalorder %s21, 1
        %s219 = scalar_select %p218, %s21, 1
        %s220 = smul.addr %s219, 4
        %s221 = scalar_lea.vmem %s2, %s220
        %v223 = vld [vmem:[%s214] sm:$0xff]
        %v224 = vld [vmem:[%s217] sm:$0x1]
        %v225 = vld [vmem:[%s221] sm:$0xf]
        %227 = vset.pattern.permute.xlu0 0
        %228 = vperm.xlu0 %227, %v223
        %v229 = vpop.permute.xlu0 %228
        %v232 = vlaneseq
        %v233 = vshrl.u32 %v232, 7
        %v234 = vsub.s32 0, %v233
        %v235 = vrot.slane %v224, %v234
        %v237 = vadd.f32 %v229, %v235
        %vm238 = vcmp.gt.f32.partialorder %v237, 0.0
        %v239 = vmul.f32 %v237, 0.2
        %v240 = vsel %vm238, %v237, %v239
        %vm241 = vcmask 64512
        %v242 = vsel %vm241, %v240, -inf
        %243 = vmax.xlane.f32.xlu0 %v242
        %v244 = vpop.xlane.xlu0 %243
        %v245 = vsub.f32 %v240, %v244
        %v246 = vmul.f32 %v245, 1.442695
        %v247 = vpow.pop %v246
        %v248 = vsel %vm241, %v247, 0.0
        %249 = vadd.xlane.f32.xlu0 %v248
        %v250 = vpop.xlane.xlu0 %249
        %v251 = vpack.c.bf16 %v247, %v247
        %v253 = vsel %vm241, %v251, 0
        %vm255 = vcmask 1043456
        %v257 = vsel %vm255, %v225, 0
        %259 = vmatprep.subr.bf16.mxu0 0
        %260 = vmatpush1.bf16.msra.mxu0 %v257
        %261 = vmatprep.subr.bf16.mxu0 0
        %262 = vmatpush1.bf16.msra.mxu0 0
        %263 = vmatprep.subr.bf16.mxu0 0
        %264 = vmatpush1.bf16.msra.mxu0 0
        %265 = vmatprep.subr.bf16.mxu0 0
        %266 = vmatpush1.bf16.msra.mxu0 0
        %267 = vmatprep.subr.bf16.mxu0 0
        %268 = vmatpush1.bf16.msra.mxu0 0
        %269 = vmatprep.subr.bf16.mxu0 0
        %270 = vmatpush1.bf16.msra.mxu0 0
        %271 = vmatprep.subr.bf16.mxu0 0
        %272 = vmatpush1.bf16.msra.mxu0 0
        %273 = vmatprep.subr.bf16.mxu0 0
        %274 = vmatpush1.bf16.msra.mxu0 0
        %275 = vmatprep.subr.bf16.mxu0 0
        %276 = vmatpush1.bf16.msra.mxu0 0
        %277 = vmatprep.subr.bf16.mxu0 0
        %278 = vmatpush1.bf16.msra.mxu0 0
        %279 = vmatprep.subr.bf16.mxu0 0
        %280 = vmatpush1.bf16.msra.mxu0 0
        %281 = vmatprep.subr.bf16.mxu0 0
        %282 = vmatpush1.bf16.msra.mxu0 0
        %283 = vmatprep.subr.bf16.mxu0 0
        %284 = vmatpush1.bf16.msra.mxu0 0
        %285 = vmatprep.subr.bf16.mxu0 0
        %286 = vmatpush1.bf16.msra.mxu0 0
        %287 = vmatprep.subr.bf16.mxu0 0
        %288 = vmatpush1.bf16.msra.mxu0 0
        %289 = vmatprep.subr.bf16.mxu0 0
        %290 = vmatpush1.bf16.msra.mxu0 0
        %291 = vmatprep.mubr.bf16.mxu0 0
        %292 = vmatmul.mubr.bf16.gmra.mrb[0].mxu0 %v253
        %v293 = vpop.f32.mrb[0].mxu0
        %v294 = vadd.f32 0.0, %v293
        %v295 = vpop.f32.mrb[0].mxu0
        %v296 = vpop.f32.mrb[0].mxu0
        %v297 = vpop.f32.mrb[0].mxu0
        %298 = vdwg.mxu0
        %v299 = vrcp.pop %v250
        %v300 = vmul.f32 %v294, %v299
        %301 = vst [vmem:[%s207] sm:$0xff] %v300
        %s302 = sand.u32 %s119, 1
        %s303 = scalar_lea.sflag [#allocation3], %s302
        %s304 = sand.u32 %s119, 1
        %s305 = smul.addr %s304, 8
        %s306 = scalar_lea.vmem [#allocation2], %s305
        // Predicated region
        $region33: #{tpu_custom_call.1} parent=31 // pred_check
          %p307 = pneg %p129
        $region34: #{tpu_custom_call.1} parent=31 // pred_check_branch
          %309 = sbr.rel (%p307) target = $region36
        $region35: #{tpu_custom_call.1} parent=31 // pred_region
          %s311 = ssub.s32 128, 128
          %312 = vsyncadd %s303, %s311
          %s313 = sadd.s32 %s22, %s21
          %s314 = smul.addr %s313, 128
          %s315 = scalar_lea.hbm %s3, %s314
          %s317 = sshll.u32 %s306, 4
          %s318 = int_to_ptr.vmem [resolvable:$true] %s317
          %320 = dma.vmem_to_hbm [thread:$0]  %s318, 128, %s315, %s303
        $region36: #{tpu_custom_call.1} parent=31 // pred_fallthru
          _
      $region32: #{tpu_custom_call.1} parent=5 // pred_fallthru
        _
      %p321 = scmp.le.s32.totalorder 2, %s12
      // Predicated region
      $region37: #{tpu_custom_call.1} parent=5 // pred_check
        %p322 = pneg %p321
      $region38: #{tpu_custom_call.1} parent=5 // pred_check_branch
        %324 = sbr.rel (%p322) target = $region40
      $region39: #{tpu_custom_call.1} parent=5 // pred_region
        %s325 = ssub.s32 %s12, 2
        // Predicated region
        $region41: #{tpu_custom_call.1} parent=39 // pred_check
          %p326 = pneg %p135
        $region42: #{tpu_custom_call.1} parent=39 // pred_check_branch
          %328 = sbr.rel (%p326) target = $region44
        $region43: #{tpu_custom_call.1} parent=39 // pred_region
          %s329 = sand.u32 %s120, 1
          %s330 = scalar_lea.sflag [#allocation3], %s329
          %s331 = sand.u32 %s120, 1
          %s332 = smul.addr %s331, 8
          %s333 = scalar_lea.vmem [#allocation2], %s332
          %334 = dma.done %s330, 128
        $region44: #{tpu_custom_call.1} parent=39 // pred_fallthru
          _
      $region40: #{tpu_custom_call.1} parent=5 // pred_fallthru
        _
    $region6: #{tpu_custom_call.1} parent=1 // loop_footer
      %s16 = sadd.s32 1, %s12
    $region7: #{tpu_custom_call.1} parent=1 // loop_footer_branch
      %11 = sbr.rel target = $region3
    $region8: #{tpu_custom_call.1} parent=1 // loop_exit
      _
    %335 = vsyncpa [#allocation3], 1
    %s336 = scalar_lea.sflag [#allocation3], 1
    %337 = vsyncpa %s336, 1

</llo_original>
